<compile_context>
chip_gen: v5e
topology: v5e:2x2
jax: 0.10.0
libtpu: 0.0.40
codegen_flags: <defaults>
</compile_context>

<pallas_src>
import jax
import jax.numpy as jnp
import numpy as np
from jax.experimental import pallas as pl
from jax.experimental.pallas import tpu as pltpu

IN_NET = 24   # the module always consumes x[:, :24] for the MLP


# ---------------------------------------------------------------------------
# Fused kernel: MLP + diag bias (pre-folded) + softmax(dim=-2) + (T - I) @ x_t
# ---------------------------------------------------------------------------
def _fused_kernel(x_ref, xt_ref, w1_ref, b1_ref, w2_ref, b2_ref, w3_ref,
                  b3_ref, mcol_ref, expcol_ref, mrow_ref, out_ref):
    x_trans = xt_ref[...]                                    # (tb, OF) f32

    # ---- MLP: bf16 operands on the MXU, f32 accumulation --------------------
    # w1 is zero-padded to (F, width) so we contract the full aligned x block
    # (no lane-offset x[:, :24] slice).
    h = jnp.dot(x_ref[...].astype(jnp.bfloat16), w1_ref[...],
                preferred_element_type=jnp.float32) + b1_ref[...]
    h = jnp.maximum(h, 0.0)
    h = jnp.dot(h.astype(jnp.bfloat16), w2_ref[...],
                preferred_element_type=jnp.float32) + b2_ref[...]
    h = jnp.maximum(h, 0.0)
    # b3 already carries the +bias on the diagonal (folded in the wrapper).
    logits = jnp.dot(h.astype(jnp.bfloat16), w3_ref[...],
                     preferred_element_type=jnp.float32) + b3_ref[...]
    # logits: (tb, OF*OF) with flat index k = i*OF + j, i = softmax axis (dim=-2)

    # ---- softmax over dim=-2 on the flat layout ------------------------------
    # softmax is shift-invariant, so the per-sample global max is a valid
    # (overflow-safe) shift; the per-column sums below normalize each column.
    # TODO(synk): a column whose logits all sit >~87 below the sample's global
    #             max would underflow to 0/0 here, where torch (f64, per-column
    #             max) would not; unreachable with the +13 diagonal bias and
    #             bounded MLP outputs.
    m = jnp.max(logits, axis=-1, keepdims=True)
    e = jnp.exp(logits - m)                                  # (tb, OF2), f32
    s = jnp.dot(e, mcol_ref[...],
                preferred_element_type=jnp.float32)          # (tb, OF) column sums

    # Exact divide: deltas are O(1e-5) against O(1) inputs (T ~= I thanks to
    # the +13 diagonal), so an approximate reciprocal's relative error would
    # swamp them.
    y = x_trans / s                                          # (tb, OF)
    y_exp = jnp.dot(y, expcol_ref[...],
                    preferred_element_type=jnp.float32)      # (tb, OF2): y[j(k)]

    # deltas[b,i] = sum_j T[b,i,j] * x_trans[b,j] - x_trans[b,i]
    out_ref[...] = jnp.dot(e * y_exp, mrow_ref[...],
                           preferred_element_type=jnp.float32) - x_trans


# ---------------------------------------------------------------------------
# Wrapper
# ---------------------------------------------------------------------------
def transition_model_forward(x, params, out_features, *, bias=13.0, tb=None):
    w1, b1, w2, b2, w3, b3 = params
    B, F = x.shape
    OF = out_features
    OF2 = OF * OF
    width = w1.shape[1]
    assert F == IN_NET + OF

    x = x.astype(jnp.float32)
    x_trans = x[:, IN_NET:]          # separate, lane-0-aligned kernel input

    # Host-side integer index math (exact for any OF).
    k = np.arange(OF2)
    i_idx, j_idx = k // OF, k % OF
    diag = (i_idx == j_idx).astype(np.float32)

    # Fold logits.diagonal().add_(bias) into fc_out's bias (identical math).
    b3_eff = b3.astype(jnp.float32) + jnp.float32(bias) * jnp.asarray(diag)[None, :]

    # One-hot gather/scatter matrices for the flat softmax (~2 KiB, DMA'd once).
    m_col = jnp.asarray((j_idx[:, None] == np.arange(OF)[None, :])
                        .astype(np.float32))                  # (OF2, OF): k -> col j
    m_row = jnp.asarray((i_idx[:, None] == np.arange(OF)[None, :])
                        .astype(np.float32))                  # (OF2, OF): k -> row i
    expand_col = m_col.T                                      # (OF, OF2): col j -> lanes k

    # Zero-pad fc_in's weight so the first matmul contracts the full x block.
    w1p = jnp.pad(w1.astype(jnp.float32), ((0, OF), (0, 0)))

    # MLP weights as bf16 (single-pass MXU); accumulation stays f32 in-kernel.
    w1p = w1p.astype(jnp.bfloat16)
    w2b = w2.astype(jnp.bfloat16)
    w3b = w3.astype(jnp.bfloat16)

    # Batch tile heuristic (see header).
    if tb is None:
        if B <= 1024:
            tb = max(8, ((B + 7) // 8) * 8)          # single tile for small B
        else:
            n = pl.cdiv(B, 1024)
            n += n % 2                               # even tile count for v7x's 2 TCs
            tb = ((pl.cdiv(B, n) + 7) // 8) * 8
    n_tiles = pl.cdiv(B, tb)
    B_pad = n_tiles * tb
    if B_pad != B:
        x = jnp.pad(x, ((0, B_pad - B), (0, 0)))
        x_trans = jnp.pad(x_trans, ((0, B_pad - B), (0, 0)))

    cost = pl.CostEstimate(
        flops=2 * B_pad * (F * width + width * width + width * OF2
                           + OF2 * OF + OF * OF2 + OF2 * OF),
        transcendentals=B_pad * OF2,
        bytes_accessed=(4 * B_pad * (F + 2 * OF)
                        + 2 * (F * width + width * width + width * OF2)
                        + 4 * (2 * width + OF2 + 3 * OF2 * OF)))

    out = pl.pallas_call(
        _fused_kernel,
        out_shape=jax.ShapeDtypeStruct((B_pad, OF), jnp.float32),
        grid=(n_tiles,),
        in_specs=[
            pl.BlockSpec((tb, F), lambda i: (i, 0)),          # x
            pl.BlockSpec((tb, OF), lambda i: (i, 0)),         # x_trans
            pl.BlockSpec((F, width), lambda i: (0, 0)),       # w1 (padded, bf16)
            pl.BlockSpec((1, width), lambda i: (0, 0)),       # b1
            pl.BlockSpec((width, width), lambda i: (0, 0)),   # w2 (bf16)
            pl.BlockSpec((1, width), lambda i: (0, 0)),       # b2
            pl.BlockSpec((width, OF2), lambda i: (0, 0)),     # w3 (bf16)
            pl.BlockSpec((1, OF2), lambda i: (0, 0)),         # b3 (+diag bias)
            pl.BlockSpec((OF2, OF), lambda i: (0, 0)),        # m_col
            pl.BlockSpec((OF, OF2), lambda i: (0, 0)),        # expand_col
            pl.BlockSpec((OF2, OF), lambda i: (0, 0)),        # m_row
        ],
        out_specs=pl.BlockSpec((tb, OF), lambda i: (i, 0)),
        compiler_params=pltpu.CompilerParams(
            dimension_semantics=("parallel",)),
        cost_estimate=cost,
    )(x, x_trans,
      w1p, b1.astype(jnp.float32),
      w2b, b2.astype(jnp.float32),
      w3b, b3_eff,
      m_col, expand_col, m_row)

    return out[:B] if B_pad != B else out


# ---------------------------------------------------------------------------
# Deterministic parameter init (synthetic; mirrors the nn.Linear shapes)
# ---------------------------------------------------------------------------
def init_params(key, out_features, width):
    ks = jax.random.split(key, 6)

    def linear(kw, kb, fan_in, fan_out):
        lim = 1.0 / np.sqrt(fan_in)
        w = jax.random.uniform(kw, (fan_in, fan_out), jnp.float32, -lim, lim)
        b = jax.random.uniform(kb, (1, fan_out), jnp.float32, -lim, lim)
        return w, b

    w1, b1 = linear(ks[0], ks[1], IN_NET, width)                       # fc_in
    w2, b2 = linear(ks[2], ks[3], width, width)                        # hidden
    w3, b3 = linear(ks[4], ks[5], width, out_features * out_features)  # fc_out
    return (w1, b1, w2, b2, w3, b3)


# ---------------------------------------------------------------------------
# Pure-JAX reference (same math as the PyTorch forward, in f32)
# ---------------------------------------------------------------------------
def reference_forward(x, params, out_features, bias=13.0):
    w1, b1, w2, b2, w3, b3 = params
    OF = out_features
    x = x.astype(jnp.float32)
    x_net, x_trans = x[:, :IN_NET], x[:, IN_NET:]
    h = jnp.maximum(x_net @ w1 + b1, 0.0)
    h = jnp.maximum(h @ w2 + b2, 0.0)
    logits = (h @ w3 + b3).reshape(-1, OF, OF)
    logits = logits + bias * jnp.eye(OF, dtype=jnp.float32)
    tm = jax.nn.softmax(logits, axis=-2)
    tm_no_diag = tm - jnp.eye(OF, dtype=jnp.float32)
    return jnp.einsum('bij,bj->bi', tm_no_diag, x_trans)


if __name__ == "__main__":
    OUT_FEATURES = 8     # x_for_transition width
    WIDTH = 32
    BATCH = 16

    key = jax.random.PRNGKey(0)
    kx, kp = jax.random.split(key)
    x = jax.random.normal(kx, (BATCH, IN_NET + OUT_FEATURES), dtype=jnp.float32)
    params = init_params(kp, OUT_FEATURES, WIDTH)

    out = transition_model_forward(x, params, OUT_FEATURES, bias=13.0)
    out = jax.block_until_ready(out)

    ref = jax.block_until_ready(reference_forward(x, params, OUT_FEATURES))
    # tolerance vs the f32 reference: the kernel's bf16 MXU operands in the
    # MLP perturb deltas by ~1e-6 absolute here (softmax / divide are exact f32).
    np.testing.assert_allclose(np.asarray(out), np.asarray(ref),
                               rtol=1e-2, atol=2e-3)
    print("KERNEL_OK")
</pallas_src>

<mosaic_0001>
module attributes {stable_mosaic.version = 11 : i64} {
  func.func @_fused_kernel(%arg0: i32, %arg1: memref<16x32xf32, #tpu.memory_space<vmem>>, %arg2: memref<16x8xf32, #tpu.memory_space<vmem>>, %arg3: memref<32x32xbf16, #tpu.memory_space<vmem>>, %arg4: memref<1x32xf32, #tpu.memory_space<vmem>>, %arg5: memref<32x32xbf16, #tpu.memory_space<vmem>>, %arg6: memref<1x32xf32, #tpu.memory_space<vmem>>, %arg7: memref<32x64xbf16, #tpu.memory_space<vmem>>, %arg8: memref<1x64xf32, #tpu.memory_space<vmem>>, %arg9: memref<64x8xf32, #tpu.memory_space<vmem>>, %arg10: memref<8x64xf32, #tpu.memory_space<vmem>>, %arg11: memref<64x8xf32, #tpu.memory_space<vmem>>, %arg12: memref<16x8xf32, #tpu.memory_space<vmem>>) attributes {dimension_semantics = [#tpu.dimension_semantics<parallel>], iteration_bounds = array<i64: 1>, scalar_prefetch = 0 : i64, scratch_operands = 0 : i64, tpu.core_type = #tpu.core_type<tc>, window_params = [{transform_indices = @transform_0, window_bounds = array<i64: 16, 32>}, {transform_indices = @transform_1, window_bounds = array<i64: 16, 8>}, {pipeline_mode = #tpu.pipeline_mode<synchronous>, transform_indices = @transform_2, window_bounds = array<i64: 32, 32>}, {pipeline_mode = #tpu.pipeline_mode<synchronous>, transform_indices = @transform_3, window_bounds = array<i64: 1, 32>}, {pipeline_mode = #tpu.pipeline_mode<synchronous>, transform_indices = @transform_4, window_bounds = array<i64: 32, 32>}, {pipeline_mode = #tpu.pipeline_mode<synchronous>, transform_indices = @transform_5, window_bounds = array<i64: 1, 32>}, {pipeline_mode = #tpu.pipeline_mode<synchronous>, transform_indices = @transform_6, window_bounds = array<i64: 32, 64>}, {pipeline_mode = #tpu.pipeline_mode<synchronous>, transform_indices = @transform_7, window_bounds = array<i64: 1, 64>}, {pipeline_mode = #tpu.pipeline_mode<synchronous>, transform_indices = @transform_8, window_bounds = array<i64: 64, 8>}, {pipeline_mode = #tpu.pipeline_mode<synchronous>, transform_indices = @transform_9, window_bounds = array<i64: 8, 64>}, {pipeline_mode = #tpu.pipeline_mode<synchronous>, transform_indices = @transform_10, window_bounds = array<i64: 64, 8>}, {transform_indices = @transform_11, window_bounds = array<i64: 16, 8>}]} {
    %c0 = arith.constant 0 : index
    %c0_0 = arith.constant 0 : index
    %0 = vector.load %arg2[%c0, %c0_0] : memref<16x8xf32, #tpu.memory_space<vmem>>, vector<16x8xf32>
    %c0_1 = arith.constant 0 : index
    %c0_2 = arith.constant 0 : index
    %1 = vector.load %arg1[%c0_1, %c0_2] : memref<16x32xf32, #tpu.memory_space<vmem>>, vector<16x32xf32>
    %2 = arith.truncf %1 : vector<16x32xf32> to vector<16x32xbf16>
    %c0_3 = arith.constant 0 : index
    %c0_4 = arith.constant 0 : index
    %3 = vector.load %arg3[%c0_3, %c0_4] : memref<32x32xbf16, #tpu.memory_space<vmem>>, vector<32x32xbf16>
    %cst = arith.constant dense<0.000000e+00> : vector<16x32xf32>
    %4 = tpu.matmul %2, %3, %cst {dimension_numbers = #tpu.dot_dimension_numbers<[1], [0], [0], [1], [0, 0, 1, 1], [], []>} : vector<16x32xbf16>, vector<32x32xbf16>, vector<16x32xf32> -> vector<16x32xf32>
    %c0_5 = arith.constant 0 : index
    %c0_6 = arith.constant 0 : index
    %5 = vector.load %arg4[%c0_5, %c0_6] : memref<1x32xf32, #tpu.memory_space<vmem>>, vector<1x32xf32>
    %6 = vector.broadcast %5 : vector<1x32xf32> to vector<16x32xf32>
    %7 = arith.addf %4, %6 : vector<16x32xf32>
    %cst_7 = arith.constant 0.000000e+00 : f32
    %8 = vector.broadcast %cst_7 : f32 to vector<16x32xf32>
    %9 = arith.maximumf %7, %8 : vector<16x32xf32>
    %10 = arith.truncf %9 : vector<16x32xf32> to vector<16x32xbf16>
    %c0_8 = arith.constant 0 : index
    %c0_9 = arith.constant 0 : index
    %11 = vector.load %arg5[%c0_8, %c0_9] : memref<32x32xbf16, #tpu.memory_space<vmem>>, vector<32x32xbf16>
    %cst_10 = arith.constant dense<0.000000e+00> : vector<16x32xf32>
    %12 = tpu.matmul %10, %11, %cst_10 {dimension_numbers = #tpu.dot_dimension_numbers<[1], [0], [0], [1], [0, 0, 1, 1], [], []>} : vector<16x32xbf16>, vector<32x32xbf16>, vector<16x32xf32> -> vector<16x32xf32>
    %c0_11 = arith.constant 0 : index
    %c0_12 = arith.constant 0 : index
    %13 = vector.load %arg6[%c0_11, %c0_12] : memref<1x32xf32, #tpu.memory_space<vmem>>, vector<1x32xf32>
    %14 = vector.broadcast %13 : vector<1x32xf32> to vector<16x32xf32>
    %15 = arith.addf %12, %14 : vector<16x32xf32>
    %cst_13 = arith.constant 0.000000e+00 : f32
    %16 = vector.broadcast %cst_13 : f32 to vector<16x32xf32>
    %17 = arith.maximumf %15, %16 : vector<16x32xf32>
    %18 = arith.truncf %17 : vector<16x32xf32> to vector<16x32xbf16>
    %c0_14 = arith.constant 0 : index
    %c0_15 = arith.constant 0 : index
    %19 = vector.load %arg7[%c0_14, %c0_15] : memref<32x64xbf16, #tpu.memory_space<vmem>>, vector<32x64xbf16>
    %cst_16 = arith.constant dense<0.000000e+00> : vector<16x64xf32>
    %20 = tpu.matmul %18, %19, %cst_16 {dimension_numbers = #tpu.dot_dimension_numbers<[1], [0], [0], [1], [0, 0, 1, 1], [], []>} : vector<16x32xbf16>, vector<32x64xbf16>, vector<16x64xf32> -> vector<16x64xf32>
    %c0_17 = arith.constant 0 : index
    %c0_18 = arith.constant 0 : index
    %21 = vector.load %arg8[%c0_17, %c0_18] : memref<1x64xf32, #tpu.memory_space<vmem>>, vector<1x64xf32>
    %22 = vector.broadcast %21 : vector<1x64xf32> to vector<16x64xf32>
    %23 = arith.addf %20, %22 : vector<16x64xf32>
    %cst_19 = arith.constant dense<0xFF800000> : vector<16xf32>
    %24 = vector.multi_reduction <maximumf>, %23, %cst_19 [1] : vector<16x64xf32> to vector<16xf32>
    %25 = vector.shape_cast %24 : vector<16xf32> to vector<16x1xf32>
    %26 = vector.broadcast %25 : vector<16x1xf32> to vector<16x64xf32>
    %27 = arith.subf %23, %26 : vector<16x64xf32>
    %28 = math.exp %27 : vector<16x64xf32>
    %c0_20 = arith.constant 0 : index
    %c0_21 = arith.constant 0 : index
    %29 = vector.load %arg9[%c0_20, %c0_21] : memref<64x8xf32, #tpu.memory_space<vmem>>, vector<64x8xf32>
    %cst_22 = arith.constant dense<0.000000e+00> : vector<16x8xf32>
    %30 = tpu.matmul %28, %29, %cst_22 {dimension_numbers = #tpu.dot_dimension_numbers<[1], [0], [0], [1], [0, 0, 1, 1], [], []>} : vector<16x64xf32>, vector<64x8xf32>, vector<16x8xf32> -> vector<16x8xf32>
    %31 = arith.divf %0, %30 : vector<16x8xf32>
    %c0_23 = arith.constant 0 : index
    %c0_24 = arith.constant 0 : index
    %32 = vector.load %arg10[%c0_23, %c0_24] : memref<8x64xf32, #tpu.memory_space<vmem>>, vector<8x64xf32>
    %cst_25 = arith.constant dense<0.000000e+00> : vector<16x64xf32>
    %33 = tpu.matmul %31, %32, %cst_25 {dimension_numbers = #tpu.dot_dimension_numbers<[1], [0], [0], [1], [0, 0, 1, 1], [], []>} : vector<16x8xf32>, vector<8x64xf32>, vector<16x64xf32> -> vector<16x64xf32>
    %34 = arith.mulf %28, %33 : vector<16x64xf32>
    %c0_26 = arith.constant 0 : index
    %c0_27 = arith.constant 0 : index
    %35 = vector.load %arg11[%c0_26, %c0_27] : memref<64x8xf32, #tpu.memory_space<vmem>>, vector<64x8xf32>
    %cst_28 = arith.constant dense<0.000000e+00> : vector<16x8xf32>
    %36 = tpu.matmul %34, %35, %cst_28 {dimension_numbers = #tpu.dot_dimension_numbers<[1], [0], [0], [1], [0, 0, 1, 1], [], []>} : vector<16x64xf32>, vector<64x8xf32>, vector<16x8xf32> -> vector<16x8xf32>
    %37 = arith.subf %36, %0 : vector<16x8xf32>
    %c0_29 = arith.constant 0 : index
    %c0_30 = arith.constant 0 : index
    %38 = vector.load %arg12[%c0_29, %c0_30] : memref<16x8xf32, #tpu.memory_space<vmem>>, vector<16x8xf32>
    tpu.vector_store %arg12[%c0_29, %c0_30], %37 {strides = array<i32>} : memref<16x8xf32, #tpu.memory_space<vmem>>, vector<16x8xf32>,
    return
  }
  func.func @transform_0(%arg0: i32) -> (i32, i32) {
    %c0_i32 = arith.constant 0 : i32
    %c0_i32_0 = arith.constant 0 : i32
    return %arg0, %c0_i32 : i32, i32
  }
  func.func @transform_1(%arg0: i32) -> (i32, i32) {
    %c0_i32 = arith.constant 0 : i32
    %c0_i32_0 = arith.constant 0 : i32
    return %arg0, %c0_i32 : i32, i32
  }
  func.func @transform_2(%arg0: i32) -> (i32, i32) {
    %c0_i32 = arith.constant 0 : i32
    %c0_i32_0 = arith.constant 0 : i32
    %c0_i32_1 = arith.constant 0 : i32
    return %c0_i32, %c0_i32_0 : i32, i32
  }
  func.func @transform_3(%arg0: i32) -> (i32, i32) {
    %c0_i32 = arith.constant 0 : i32
    %c0_i32_0 = arith.constant 0 : i32
    %c0_i32_1 = arith.constant 0 : i32
    return %c0_i32, %c0_i32_0 : i32, i32
  }
  func.func @transform_4(%arg0: i32) -> (i32, i32) {
    %c0_i32 = arith.constant 0 : i32
    %c0_i32_0 = arith.constant 0 : i32
    %c0_i32_1 = arith.constant 0 : i32
    return %c0_i32, %c0_i32_0 : i32, i32
  }
  func.func @transform_5(%arg0: i32) -> (i32, i32) {
    %c0_i32 = arith.constant 0 : i32
    %c0_i32_0 = arith.constant 0 : i32
    %c0_i32_1 = arith.constant 0 : i32
    return %c0_i32, %c0_i32_0 : i32, i32
  }
  func.func @transform_6(%arg0: i32) -> (i32, i32) {
    %c0_i32 = arith.constant 0 : i32
    %c0_i32_0 = arith.constant 0 : i32
    %c0_i32_1 = arith.constant 0 : i32
    return %c0_i32, %c0_i32_0 : i32, i32
  }
  func.func @transform_7(%arg0: i32) -> (i32, i32) {
    %c0_i32 = arith.constant 0 : i32
    %c0_i32_0 = arith.constant 0 : i32
    %c0_i32_1 = arith.constant 0 : i32
    return %c0_i32, %c0_i32_0 : i32, i32
  }
  func.func @transform_8(%arg0: i32) -> (i32, i32) {
    %c0_i32 = arith.constant 0 : i32
    %c0_i32_0 = arith.constant 0 : i32
    %c0_i32_1 = arith.constant 0 : i32
    return %c0_i32, %c0_i32_0 : i32, i32
  }
  func.func @transform_9(%arg0: i32) -> (i32, i32) {
    %c0_i32 = arith.constant 0 : i32
    %c0_i32_0 = arith.constant 0 : i32
    %c0_i32_1 = arith.constant 0 : i32
    return %c0_i32, %c0_i32_0 : i32, i32
  }
  func.func @transform_10(%arg0: i32) -> (i32, i32) {
    %c0_i32 = arith.constant 0 : i32
    %c0_i32_0 = arith.constant 0 : i32
    %c0_i32_1 = arith.constant 0 : i32
    return %c0_i32, %c0_i32_0 : i32, i32
  }
  func.func @transform_11(%arg0: i32) -> (i32, i32) {
    %c0_i32 = arith.constant 0 : i32
    %c0_i32_0 = arith.constant 0 : i32
    return %arg0, %c0_i32 : i32, i32
  }
}

</mosaic_0001>

<llo_original>
// kernel: tpu_custom_call.1
$region0: #{tpu_custom_call.1}
  #allocation0 [shape = 'u32[]', space=smem, size = 0x4, offset = 0x4, fixed_abs, tag = 'smem constant byte address 0x4 - core index']
  #allocation1 [shape = 'u32[72,128]{1,0:T(1,128)}', space=vmem, size = 0x9000, scoped, tag = 'internal scratch']
  %s0 = inlined_call_operand.vmem [shape: f32[16,32], index: 0, kind: input, shape index: {}]
  %s1 = inlined_call_operand.vmem [shape: f32[16,8], index: 1, kind: input, shape index: {}]
  %s2 = inlined_call_operand.vmem [shape: bf16[32,32], index: 2, kind: input, shape index: {}]
  %s3 = inlined_call_operand.vmem [shape: f32[1,32], index: 3, kind: input, shape index: {}]
  %s4 = inlined_call_operand.vmem [shape: bf16[32,32], index: 4, kind: input, shape index: {}]
  %s5 = inlined_call_operand.vmem [shape: f32[1,32], index: 5, kind: input, shape index: {}]
  %s6 = inlined_call_operand.vmem [shape: bf16[32,64], index: 6, kind: input, shape index: {}]
  %s7 = inlined_call_operand.vmem [shape: f32[1,64], index: 7, kind: input, shape index: {}]
  %s8 = inlined_call_operand.vmem [shape: f32[64,8], index: 8, kind: input, shape index: {}]
  %s9 = inlined_call_operand.vmem [shape: f32[8,64], index: 9, kind: input, shape index: {}]
  %s10 = inlined_call_operand.vmem [shape: f32[64,8], index: 10, kind: input, shape index: {}]
  %s11 = inlined_call_operand.vmem [shape: f32[16,8], index: 11, kind: output, shape index: {}]
  %s12 = sld [smem:[#allocation0]]
  $region54: #{tpu_custom_call.1} parent=0
    _
  %s14 = ssub.s32 1, %s12
  %s15 = scalar_select 0, %s14, %s12
  // Predicated region
  $region2: #{tpu_custom_call.1} parent=0 // pred_check
    _
  $region3: #{tpu_custom_call.1} parent=0 // pred_check_branch
    %17 = sbr.rel (0) target = $region5
  $region4: #{tpu_custom_call.1} parent=0 // pred_region
    _
  $region5: #{tpu_custom_call.1} parent=0 // pred_fallthru
    _
  // Predicated region
  $region6: #{tpu_custom_call.1} parent=0 // pred_check
    _
  $region7: #{tpu_custom_call.1} parent=0 // pred_check_branch
    %19 = sbr.rel (0) target = $region9
  $region8: #{tpu_custom_call.1} parent=0 // pred_region
    _
  $region9: #{tpu_custom_call.1} parent=0 // pred_fallthru
    _
  // Predicated region
  $region10: #{tpu_custom_call.1} parent=0 // pred_check
    _
  $region11: #{tpu_custom_call.1} parent=0 // pred_check_branch
    %21 = sbr.rel (0) target = $region13
  $region12: #{tpu_custom_call.1} parent=0 // pred_region
    _
  $region13: #{tpu_custom_call.1} parent=0 // pred_fallthru
    _
  // Predicated region
  $region14: #{tpu_custom_call.1} parent=0 // pred_check
    _
  $region15: #{tpu_custom_call.1} parent=0 // pred_check_branch
    %23 = sbr.rel (0) target = $region17
  $region16: #{tpu_custom_call.1} parent=0 // pred_region
    _
  $region17: #{tpu_custom_call.1} parent=0 // pred_fallthru
    _
  // Predicated region
  $region18: #{tpu_custom_call.1} parent=0 // pred_check
    _
  $region19: #{tpu_custom_call.1} parent=0 // pred_check_branch
    %25 = sbr.rel (0) target = $region21
  $region20: #{tpu_custom_call.1} parent=0 // pred_region
    _
  $region21: #{tpu_custom_call.1} parent=0 // pred_fallthru
    _
  // Predicated region
  $region22: #{tpu_custom_call.1} parent=0 // pred_check
    _
  $region23: #{tpu_custom_call.1} parent=0 // pred_check_branch
    %27 = sbr.rel (0) target = $region25
  $region24: #{tpu_custom_call.1} parent=0 // pred_region
    _
  $region25: #{tpu_custom_call.1} parent=0 // pred_fallthru
    _
  // Predicated region
  $region26: #{tpu_custom_call.1} parent=0 // pred_check
    _
  $region27: #{tpu_custom_call.1} parent=0 // pred_check_branch
    %29 = sbr.rel (0) target = $region29
  $region28: #{tpu_custom_call.1} parent=0 // pred_region
    _
  $region29: #{tpu_custom_call.1} parent=0 // pred_fallthru
    _
  // Predicated region
  $region30: #{tpu_custom_call.1} parent=0 // pred_check
    _
  $region31: #{tpu_custom_call.1} parent=0 // pred_check_branch
    %31 = sbr.rel (0) target = $region33
  $region32: #{tpu_custom_call.1} parent=0 // pred_region
    _
  $region33: #{tpu_custom_call.1} parent=0 // pred_fallthru
    _
  // Predicated region
  $region34: #{tpu_custom_call.1} parent=0 // pred_check
    _
  $region35: #{tpu_custom_call.1} parent=0 // pred_check_branch
    %33 = sbr.rel (0) target = $region37
  $region36: #{tpu_custom_call.1} parent=0 // pred_region
    _
  $region37: #{tpu_custom_call.1} parent=0 // pred_fallthru
    _
  // Predicated region
  $region38: #{tpu_custom_call.1} parent=0 // pred_check
    _
  $region39: #{tpu_custom_call.1} parent=0 // pred_check_branch
    %35 = sbr.rel (0) target = $region41
  $region40: #{tpu_custom_call.1} parent=0 // pred_region
    _
  $region41: #{tpu_custom_call.1} parent=0 // pred_fallthru
    _
  // Predicated region
  $region42: #{tpu_custom_call.1} parent=0 // pred_check
    _
  $region43: #{tpu_custom_call.1} parent=0 // pred_check_branch
    %37 = sbr.rel (0) target = $region45
  $region44: #{tpu_custom_call.1} parent=0 // pred_region
    _
  $region45: #{tpu_custom_call.1} parent=0 // pred_fallthru
    _
  %v39 = vld [vmem:[%s1] sm:$0xff]
  %v40 = vld [vmem:[%s1 + $0x8] sm:$0xff]
  %v41 = vld [vmem:[%s0] sm:$0xff]
  %v42 = vld [vmem:[%s0 + $0x8] sm:$0xff]
  %v43 = vpack.c.bf16 %v42, %v41
  %v44 = vld [vmem:[%s2] sm:$0xf]
  %v45 = vld [vmem:[%s2 + $0x4] sm:$0xf]
  %v46 = vld [vmem:[%s2 + $0x8] sm:$0xf]
  %v47 = vld [vmem:[%s2 + $0xc] sm:$0xf]
  %v48 = vld [vmem:[%s3] sm:$0x1]
  %v50 = vperm.slane %v48, 0
  %v56 = vunpack.c.l.b16 %v44
  %v57 = vunpack.c.l.b16 %v45
  %v58 = vunpack.c.l.b16 %v46
  %v59 = vunpack.c.l.b16 %v47
  %v60 = vpack.c.b16 %v57, %v56
  %v61 = vpack.c.b16 %v59, %v58
  %vm64 = vcmask 261120
  %v66 = vsel %vm64, %v43, 0
  %68 = vmatpush.bf16.msra.mxu0 0
  %69 = vmatpush.bf16.msra.mxu0 0
  %70 = vmatpush.bf16.msra.mxu0 0
  %71 = vmatpush.bf16.msra.mxu0 0
  %72 = vmatpush.bf16.msra.mxu0 0
  %73 = vmatpush.bf16.msra.mxu0 0
  %74 = vmatpush.bf16.msra.mxu0 %v61
  %75 = vmatpush.bf16.msra.mxu0 %v60
  %76 = vmatmul.bf16.gmra.mxu0 %v66
  %v77 = vpop.f32.mrf.mxu0
  %v78 = vadd.f32 %v50, %v77
  %v79 = vpop.f32.mrf.mxu0
  %v80 = vadd.f32 %v50, %v79
  %81 = vdwg.mxu0
  %v82 = vmax.f32 %v78, 0.0
  %v83 = vmax.f32 %v80, 0.0
  %v84 = vpack.c.bf16 %v83, %v82
  %v85 = vld [vmem:[%s4] sm:$0xf]
  %v86 = vld [vmem:[%s4 + $0x4] sm:$0xf]
  %v87 = vld [vmem:[%s4 + $0x8] sm:$0xf]
  %v88 = vld [vmem:[%s4 + $0xc] sm:$0xf]
  %v89 = vld [vmem:[%s5] sm:$0x1]
  %v91 = vperm.slane %v89, 0
  %v97 = vunpack.c.l.b16 %v85
  %v98 = vunpack.c.l.b16 %v86
  %v99 = vunpack.c.l.b16 %v87
  %v100 = vunpack.c.l.b16 %v88
  %v101 = vpack.c.b16 %v98, %v97
  %v102 = vpack.c.b16 %v100, %v99
  %v106 = vsel %vm64, %v84, 0
  %108 = vmatpush.bf16.msra.mxu0 0
  %109 = vmatpush.bf16.msra.mxu0 0
  %110 = vmatpush.bf16.msra.mxu0 0
  %111 = vmatpush.bf16.msra.mxu0 0
  %112 = vmatpush.bf16.msra.mxu0 0
  %113 = vmatpush.bf16.msra.mxu0 0
  %114 = vmatpush.bf16.msra.mxu0 %v102
  %115 = vmatpush.bf16.msra.mxu0 %v101
  %116 = vmatmul.bf16.gmra.mxu0 %v106
  %v117 = vpop.f32.mrf.mxu0
  %v118 = vadd.f32 %v91, %v117
  %v119 = vpop.f32.mrf.mxu0
  %v120 = vadd.f32 %v91, %v119
  %121 = vdwg.mxu0
  %v122 = vmax.f32 %v118, 0.0
  %v123 = vmax.f32 %v120, 0.0
  %v124 = vpack.c.bf16 %v123, %v122
  %v125 = vld [vmem:[%s6] sm:$0xf]
  %v126 = vld [vmem:[%s6 + $0x4] sm:$0xf]
  %v127 = vld [vmem:[%s6 + $0x8] sm:$0xf]
  %v128 = vld [vmem:[%s6 + $0xc] sm:$0xf]
  %v129 = vld [vmem:[%s7] sm:$0x1]
  %v131 = vperm.slane %v129, 0
  %v137 = vunpack.c.l.b16 %v125
  %v138 = vunpack.c.l.b16 %v126
  %v139 = vunpack.c.l.b16 %v127
  %v140 = vunpack.c.l.b16 %v128
  %v141 = vpack.c.b16 %v138, %v137
  %v142 = vpack.c.b16 %v140, %v139
  %v146 = vsel %vm64, %v124, 0
  %148 = vmatpush.bf16.msra.mxu0 0
  %149 = vmatpush.bf16.msra.mxu0 0
  %150 = vmatpush.bf16.msra.mxu0 0
  %151 = vmatpush.bf16.msra.mxu0 0
  %152 = vmatpush.bf16.msra.mxu0 0
  %153 = vmatpush.bf16.msra.mxu0 0
  %154 = vmatpush.bf16.msra.mxu0 %v142
  %155 = vmatpush.bf16.msra.mxu0 %v141
  %156 = vmatmul.bf16.gmra.mxu0 %v146
  %v157 = vpop.f32.mrf.mxu0
  %v158 = vadd.f32 %v131, %v157
  %v159 = vpop.f32.mrf.mxu0
  %v160 = vadd.f32 %v131, %v159
  %161 = vdwg.mxu0
  %vm162 = vcmask 523264
  %v163 = vsel %vm162, %v158, -inf
  %164 = vmax.xlane.f32.xlu0 %v163
  %v165 = vpop.xlane.xlu0 %164
  %v166 = vsel %vm162, %v160, -inf
  %167 = vmax.xlane.f32.xlu0 %v166
  %v168 = vpop.xlane.xlu0 %167
  %v169 = vsub.f32 %v158, %v165
  %v170 = vsub.f32 %v160, %v168
  %v171 = vmul.f32 %v169, 1.442695
  %v172 = vpow.pop %v171
  %v173 = vmul.f32 %v170, 1.442695
  %v174 = vpow.pop %v173
  %v175 = vld [vmem:[%s8] sm:$0xff]
  %v176 = vld [vmem:[%s8 + $0x8] sm:$0xff]
  %v177 = vld [vmem:[%s8 + $0x10] sm:$0xff]
  %v178 = vld [vmem:[%s8 + $0x18] sm:$0xff]
  %v179 = vld [vmem:[%s8 + $0x20] sm:$0xff]
  %v180 = vld [vmem:[%s8 + $0x28] sm:$0xff]
  %v181 = vld [vmem:[%s8 + $0x30] sm:$0xff]
  %v182 = vld [vmem:[%s8 + $0x38] sm:$0xff]
  %v184 = vsel %vm162, %v172, 0
  %v187 = vsel %vm162, %v174, 0
  %189 = vmatpush.msra.mxu0 0.0
  %190 = vmatpush.msra.mxu0 0.0
  %191 = vmatpush.msra.mxu0 0.0
  %192 = vmatpush.msra.mxu0 0.0
  %193 = vmatpush.msra.mxu0 0.0
  %194 = vmatpush.msra.mxu0 0.0
  %195 = vmatpush.msra.mxu0 0.0
  %196 = vmatpush.msra.mxu0 0.0
  %197 = vmatpush.msra.mxu0 %v182
  %198 = vmatpush.msra.mxu0 %v181
  %199 = vmatpush.msra.mxu0 %v180
  %200 = vmatpush.msra.mxu0 %v179
  %201 = vmatpush.msra.mxu0 %v178
  %202 = vmatpush.msra.mxu0 %v177
  %203 = vmatpush.msra.mxu0 %v176
  %204 = vmatpush.msra.mxu0 %v175
  %205 = vmatmul.f32.gmra.mxu0 %v184
  %v206 = vpop.f32.mrf.mxu0
  %v207 = vadd.f32 0.0, %v206
  %208 = vmatmul.f32.gmra.mxu0 %v187
  %v209 = vpop.f32.mrf.mxu0
  %v210 = vadd.f32 0.0, %v209
  %211 = vdwg.mxu0
  %v212 = vrcp.pop %v207
  %v213 = vmul.f32 %v207, %v212
  %v214 = vsub.f32 1.0, %v213
  %v215 = vmul.f32 %v212, %v214
  %v216 = vadd.f32 %v212, %v215
  %vm217 = vweird.f32 %v207
  %vm218 = vweird.f32 %v212
  %vm219 = vmor %vm217, %vm218
  %v220 = vsel %vm219, %v212, %v216
  %v221 = vand.u32 2147483647, %v207
  %vm222 = vcmp.eq.f32.partialorder %v221, 8.507059e+37
  %v223 = vand.u32 %v207, 2147483648
  %v224 = vor.u32 1.1754944e-38, %v223
  %v225 = vsel %vm222, %v224, %v220
  %v226 = vmul.f32 %v39, %v225
  %v227 = vrcp.pop %v210
  %v228 = vmul.f32 %v210, %v227
  %v229 = vsub.f32 1.0, %v228
  %v230 = vmul.f32 %v227, %v229
  %v231 = vadd.f32 %v227, %v230
  %vm232 = vweird.f32 %v210
  %vm233 = vweird.f32 %v227
  %vm234 = vmor %vm232, %vm233
  %v235 = vsel %vm234, %v227, %v231
  %v236 = vand.u32 2147483647, %v210
  %vm237 = vcmp.eq.f32.partialorder %v236, 8.507059e+37
  %v238 = vand.u32 %v210, 2147483648
  %v239 = vor.u32 1.1754944e-38, %v238
  %v240 = vsel %vm237, %v239, %v235
  %v241 = vmul.f32 %v40, %v240
  %v242 = vld [vmem:[%s9] sm:$0xff]
  %vm243 = vcmask 64512
  %v245 = vsel %vm243, %v226, 0
  %v248 = vsel %vm243, %v241, 0
  %250 = vmatpush.msra.mxu0 0.0
  %251 = vmatpush.msra.mxu0 0.0
  %252 = vmatpush.msra.mxu0 0.0
  %253 = vmatpush.msra.mxu0 0.0
  %254 = vmatpush.msra.mxu0 0.0
  %255 = vmatpush.msra.mxu0 0.0
  %256 = vmatpush.msra.mxu0 0.0
  %257 = vmatpush.msra.mxu0 0.0
  %258 = vmatpush.msra.mxu0 0.0
  %259 = vmatpush.msra.mxu0 0.0
  %260 = vmatpush.msra.mxu0 0.0
  %261 = vmatpush.msra.mxu0 0.0
  %262 = vmatpush.msra.mxu0 0.0
  %263 = vmatpush.msra.mxu0 0.0
  %264 = vmatpush.msra.mxu0 0.0
  %265 = vmatpush.msra.mxu0 %v242
  %266 = vmatmul.f32.gmra.mxu0 %v245
  %v267 = vpop.f32.mrf.mxu0
  %v268 = vadd.f32 0.0, %v267
  %269 = vmatmul.f32.gmra.mxu0 %v248
  %v270 = vpop.f32.mrf.mxu0
  %v271 = vadd.f32 0.0, %v270
  %272 = vdwg.mxu0
  %v273 = vmul.f32 %v172, %v268
  %v274 = vmul.f32 %v174, %v271
  %v275 = vld [vmem:[%s10] sm:$0xff]
  %v276 = vld [vmem:[%s10 + $0x8] sm:$0xff]
  %v277 = vld [vmem:[%s10 + $0x10] sm:$0xff]
  %v278 = vld [vmem:[%s10 + $0x18] sm:$0xff]
  %v279 = vld [vmem:[%s10 + $0x20] sm:$0xff]
  %v280 = vld [vmem:[%s10 + $0x28] sm:$0xff]
  %v281 = vld [vmem:[%s10 + $0x30] sm:$0xff]
  %v282 = vld [vmem:[%s10 + $0x38] sm:$0xff]
  %v284 = vsel %vm162, %v273, 0
  %v287 = vsel %vm162, %v274, 0
  %289 = vmatpush.msra.mxu0 0.0
  %290 = vmatpush.msra.mxu0 0.0
  %291 = vmatpush.msra.mxu0 0.0
  %292 = vmatpush.msra.mxu0 0.0
  %293 = vmatpush.msra.mxu0 0.0
  %294 = vmatpush.msra.mxu0 0.0
  %295 = vmatpush.msra.mxu0 0.0
  %296 = vmatpush.msra.mxu0 0.0
  %297 = vmatpush.msra.mxu0 %v282
  %298 = vmatpush.msra.mxu0 %v281
  %299 = vmatpush.msra.mxu0 %v280
  %300 = vmatpush.msra.mxu0 %v279
  %301 = vmatpush.msra.mxu0 %v278
  %302 = vmatpush.msra.mxu0 %v277
  %303 = vmatpush.msra.mxu0 %v276
  %304 = vmatpush.msra.mxu0 %v275
  %305 = vmatmul.f32.gmra.mxu0 %v284
  %v306 = vpop.f32.mrf.mxu0
  %v307 = vadd.f32 0.0, %v306
  %308 = vmatmul.f32.gmra.mxu0 %v287
  %v309 = vpop.f32.mrf.mxu0
  %v310 = vadd.f32 0.0, %v309
  %311 = vdwg.mxu0
  %v312 = vsub.f32 %v307, %v39
  %v313 = vsub.f32 %v310, %v40
  %314 = vst.msk [vmem:[%s11] sm:$0xff] %vm243, %v312
  %315 = vst.msk [vmem:[%s11 + $0x8] sm:$0xff] %vm243, %v313
  // Predicated region
  $region46: #{tpu_custom_call.1} parent=0 // pred_check
    _
  $region47: #{tpu_custom_call.1} parent=0 // pred_check_branch
    %317 = sbr.rel (0) target = $region49
  $region48: #{tpu_custom_call.1} parent=0 // pred_region
    _
  $region49: #{tpu_custom_call.1} parent=0 // pred_fallthru
    _
  // Predicated region
  $region50: #{tpu_custom_call.1} parent=0 // pred_check
    _
  $region51: #{tpu_custom_call.1} parent=0 // pred_check_branch
    %319 = sbr.rel (0) target = $region53
  $region52: #{tpu_custom_call.1} parent=0 // pred_region
    _
  $region53: #{tpu_custom_call.1} parent=0 // pred_fallthru
    _

</llo_original>
